<compile_context>
chip_gen: v5e
topology: v5e:2x2
jax: 0.10.0
libtpu: 0.0.40
codegen_flags: <defaults>
</compile_context>

<pallas_src>
import jax
import jax.numpy as jnp
from jax.experimental import pallas as pl
from jax.experimental.pallas import tpu as pltpu

BN_EPS = 1e-5


def _round_up(x, m):
    return ((x + m - 1) // m) * m


def _tpu_vmem_info():
    """Best-effort physical VMEM size + v5e detection (safe fallback)."""
    vmem_bytes = 64 * 1024 * 1024      # conservative default (v7x per-TC VMEM)
    is_v5e = False
    try:
        info = pltpu.get_tpu_info()
        vmem_bytes = int(info.vmem_capacity_bytes)
        ver = str(getattr(info, "chip_version", "")).upper()
        is_v5e = ("5" in ver) and ("E" in ver)
    except Exception:
        pass
    return vmem_bytes, is_v5e


def action_head_kernel(x_ref, w1_ref, b1_ref, w2_ref, b2_ref, o_ref,
                       pool_ref, hacc_ref):
    """Grid = (n, d1, mt); mt (axis 2) pools over M*T, d1 (axis 1) K-tiles fc1.

    x_ref  : (TN, TMT, TD1) input tile (any float dtype; upcast to f32 here)
    w1_ref : (TD1, H)       fc1 weight slab, BN scale and 1/(M*T) pre-folded (bf16)
    b1_ref : (1, H)         fc1 bias with BN pre-folded (f32)
    w2_ref : (H, NCp)       fc2 weight, NC padded to lane-dense 128 (bf16)
    b2_ref : (1, NCp)       fc2 bias (f32)
    o_ref  : (TN, NCp)      output tile (f32)
    pool_ref: (TN, TD1)     f32 scratch: running pooled sum for this D1 slab
    hacc_ref: (TN, H)       f32 scratch: fc1 partial-sum accumulator over D1 slabs
    """
    d1 = pl.program_id(1)
    mt = pl.program_id(2)
    n_d1 = pl.num_programs(1)
    n_mt = pl.num_programs(2)

    @pl.when(jnp.logical_and(d1 == 0, mt == 0))
    def _():
        hacc_ref[...] = jnp.zeros_like(hacc_ref)

    @pl.when(mt == 0)
    def _():
        pool_ref[...] = jnp.zeros_like(pool_ref)

    # Accumulate the (M*T)-tile sum in f32 (zero-padded rows contribute 0).
    pool_ref[...] += jnp.sum(x_ref[...].astype(jnp.float32), axis=1)

    # Partial fc1 for this D1 slab once pooling over MT is complete.
    @pl.when(mt == n_mt - 1)
    def _():
        pooled = pool_ref[...].astype(w1_ref.dtype)          # (TN, TD1) bf16
        hacc_ref[...] += jnp.dot(pooled, w1_ref[...],
                                 preferred_element_type=jnp.float32)

    # Fused bias + ReLU + fc2 epilogue only on the very last step.
    @pl.when(jnp.logical_and(d1 == n_d1 - 1, mt == n_mt - 1))
    def _():
        h = jnp.maximum(hacc_ref[...] + b1_ref[...], 0.0)    # BN folded into w1/b1
        out = jnp.dot(h.astype(w2_ref.dtype), w2_ref[...],
                      preferred_element_type=jnp.float32) + b2_ref[...]
        o_ref[...] = out.astype(o_ref.dtype)


def action_head_forward(feat, params, *, tn=None, tmt=None, td1=None,
                        weight_dtype=jnp.bfloat16):
    """feat: (N, M, T, J, C), f32 or bf16.  Returns (N, num_classes) float32."""
    w1, b1, gamma, beta, rmean, rvar, w2, b2 = params
    N, M, T, J, C = feat.shape
    D1 = J * C
    MT = M * T
    H = w1.shape[1]
    NC = w2.shape[1]
    x_itemsize = feat.dtype.itemsize

    vmem_phys, is_v5e = _tpu_vmem_info()
    # ~54 MiB scoped on v7x (64 MiB physical), 100 MiB on v5e/v6e (128 MiB).
    vmem_limit = min(int(0.85 * vmem_phys), 100 * 1024 * 1024)

    # ---- tile sizes --------------------------------------------------------
    if tn is None:
        if N >= 256 and not is_v5e:
            tn = 256                       # match v6e/v7x 256-row MXU, fewer steps
        else:
            tn = min(128, _round_up(N, 8))
    nc_pad = _round_up(NC, 128)            # lane-dense output stores

    # K-tile fc1 only when the full bf16 w1 would be large.
    if td1 is None:
        td1 = D1 if (D1 * H * 2) <= (8 << 20) else 512
    if td1 >= D1:
        td1 = D1
    else:
        td1 = min(_round_up(td1, 128), _round_up(D1, 128))
        if td1 >= D1:
            td1 = D1
    d1_pad = _round_up(D1, td1) if td1 < D1 else D1

    if tmt is None:
        # ~8 MiB X tiles (review: 4-8 MiB) to amortize ~0.35us/step overhead.
        x_tile_budget = 8 << 20
        rows = max(8, x_tile_budget // max(1, tn * td1 * x_itemsize))
        tmt = _round_up(rows, 8)
    tmt = max(8, (tmt // 8) * 8)
    tmt = min(tmt, _round_up(MT, 8))

    def _vmem_use(tmt_):
        return (2 * tn * tmt_ * td1 * x_itemsize       # X (double-buffered)
                + 2 * td1 * H * 2                       # w1 slab (bf16, x2)
                + 2 * H * 4                             # b1
                + 2 * H * nc_pad * 2                    # w2
                + 2 * nc_pad * 4                        # b2
                + 2 * tn * nc_pad * 4                   # output tile (x2)
                + tn * td1 * 4 + tn * H * 4)            # scratches

    while tmt > 8 and _vmem_use(tmt) > int(0.9 * vmem_limit):
        tmt = max(8, (tmt // 2 // 8) * 8)

    n_pad = _round_up(N, tn)
    mt_pad = _round_up(MT, tmt)

    # ---- fold BatchNorm (inference) and 1/(M*T) mean into fc1 --------------
    scale = gamma * jax.lax.rsqrt(rvar + BN_EPS)               # (H,)
    w1_f = (w1 * scale[None, :]) * (1.0 / MT)                  # (D1, H)
    b1_f = ((b1 - rmean) * scale + beta).reshape(1, H).astype(jnp.float32)

    # Low-precision MXU operands; biases & accumulation stay f32.
    w1_f = w1_f.astype(weight_dtype)
    if d1_pad != D1:
        w1_f = jnp.pad(w1_f, ((0, d1_pad - D1), (0, 0)))       # zero rows: no-op
    w2_p = jnp.zeros((H, nc_pad), weight_dtype).at[:, :NC].set(
        w2.astype(weight_dtype))
    b2_p = jnp.zeros((1, nc_pad), jnp.float32).at[0, :NC].set(
        b2.astype(jnp.float32))

    # ---- input layout: (N, M*T, J*C), zero-padded to the tile grid ---------
    x = feat.reshape(N, MT, D1)
    if n_pad != N or mt_pad != MT or d1_pad != D1:
        x = jnp.pad(x, ((0, n_pad - N), (0, mt_pad - MT), (0, d1_pad - D1)))

    grid = (n_pad // tn, d1_pad // td1, mt_pad // tmt)

    out = pl.pallas_call(
        action_head_kernel,
        out_shape=jax.ShapeDtypeStruct((n_pad, nc_pad), jnp.float32),
        grid_spec=pltpu.PrefetchScalarGridSpec(
            num_scalar_prefetch=0,
            grid=grid,
            in_specs=[
                pl.BlockSpec((tn, tmt, td1), lambda n, d1, mt: (n, mt, d1)),  # X
                pl.BlockSpec((td1, H),       lambda n, d1, mt: (d1, 0)),      # w1 slab
                pl.BlockSpec((1, H),         lambda n, d1, mt: (0, 0)),       # b1
                pl.BlockSpec((H, nc_pad),    lambda n, d1, mt: (0, 0)),       # w2
                pl.BlockSpec((1, nc_pad),    lambda n, d1, mt: (0, 0)),       # b2
            ],
            out_specs=pl.BlockSpec((tn, nc_pad), lambda n, d1, mt: (n, 0)),
            scratch_shapes=[
                pltpu.VMEM((tn, td1), jnp.float32),   # pooled-sum accumulator
                pltpu.VMEM((tn, H), jnp.float32),     # fc1 partial-sum accumulator
            ],
        ),
        compiler_params=pltpu.CompilerParams(
            dimension_semantics=("parallel", "arbitrary", "arbitrary"),
            vmem_limit_bytes=vmem_limit,
        ),
    )(x, w1_f, b1_f, w2_p, b2_p)

    return out[:N, :NC]


def reference_forward(feat, params):
    """Pure-JAX f32 reference of the PyTorch module (BN in inference mode)."""
    w1, b1, gamma, beta, rmean, rvar, w2, b2 = params
    N, M, T, J, C = feat.shape
    x = jnp.transpose(feat, (0, 1, 3, 4, 2)).mean(axis=-1)    # (N, M, J, C)
    x = x.reshape(N, M, -1).mean(axis=1)                      # (N, J*C)
    h = x @ w1 + b1
    h = (h - rmean) * jax.lax.rsqrt(rvar + BN_EPS) * gamma + beta
    h = jnp.maximum(h, 0.0)
    return h @ w2 + b2


def make_params(key, dim_rep, num_joints, hidden_dim, num_classes):
    D1 = dim_rep * num_joints
    ks = jax.random.split(key, 8)
    # fc1 / fc2 weights stored pre-transposed: (in, out)
    w1 = jax.random.uniform(ks[0], (D1, hidden_dim), jnp.float32,
                            -1.0, 1.0) / jnp.sqrt(D1)
    b1 = jax.random.uniform(ks[1], (hidden_dim,), jnp.float32,
                            -1.0, 1.0) / jnp.sqrt(D1)
    w2 = jax.random.uniform(ks[2], (hidden_dim, num_classes), jnp.float32,
                            -1.0, 1.0) / jnp.sqrt(hidden_dim)
    b2 = jax.random.uniform(ks[3], (num_classes,), jnp.float32,
                            -1.0, 1.0) / jnp.sqrt(hidden_dim)
    # BatchNorm1d params + running stats (made non-trivial on purpose)
    gamma = 1.0 + 0.1 * jax.random.normal(ks[4], (hidden_dim,), jnp.float32)
    beta = 0.1 * jax.random.normal(ks[5], (hidden_dim,), jnp.float32)
    rmean = 0.1 * jax.random.normal(ks[6], (hidden_dim,), jnp.float32)
    rvar = 1.0 + 0.1 * jax.random.uniform(ks[7], (hidden_dim,), jnp.float32)
    return (w1, b1, gamma, beta, rmean, rvar, w2, b2)


if __name__ == "__main__":
    # Small but faithful shapes: (N, M, T, J, C).  J*C = 256 so the D1
    # K-tiling path (td1=128 -> 2 slabs) is exercised alongside the MT
    # pooling loop (tmt=8 -> 2 steps).  Grid = (1, 2, 2).
    N, M, T = 2, 2, 8
    num_joints, dim_rep = 4, 64
    hidden_dim, num_classes = 128, 16

    key = jax.random.PRNGKey(0)
    k_feat, k_params = jax.random.split(key)
    feat = jax.random.normal(k_feat, (N, M, T, num_joints, dim_rep),
                             dtype=jnp.float32)
    params = make_params(k_params, dim_rep, num_joints, hidden_dim,
                         num_classes)

    ref = reference_forward(feat, params)

    # f32 X streaming, forced tiny tiles so every pl.when phase runs.
    out = action_head_forward(feat, params, tn=8, tmt=8, td1=128)
    out = jax.block_until_ready(out)
    assert out.shape == (N, num_classes)
    # bf16 MXU weights -> tolerance loosened vs the pure-f32 reference.
    assert jnp.allclose(out, ref, atol=2e-2, rtol=2e-2), "f32-input mismatch"

    # bf16 X streaming path (halves HBM traffic when the producer emits bf16;
    # the in-kernel accumulators stay f32).  Demo-only cast in the harness.
    out_bf16 = action_head_forward(feat.astype(jnp.bfloat16), params,
                                   tn=8, tmt=8, td1=128)
    out_bf16 = jax.block_until_ready(out_bf16)
    assert jnp.allclose(out_bf16, ref, atol=5e-2, rtol=5e-2), \
        "bf16-input mismatch"

    print("KERNEL_OK")
</pallas_src>

<mosaic_0001>
module attributes {stable_mosaic.version = 11 : i64} {
  func.func @action_head_kernel(%arg0: i32, %arg1: i32, %arg2: i32, %arg3: memref<8x8x128xf32, #tpu.memory_space<vmem>>, %arg4: memref<128x128xbf16, #tpu.memory_space<vmem>>, %arg5: memref<1x128xf32, #tpu.memory_space<vmem>>, %arg6: memref<128x128xbf16, #tpu.memory_space<vmem>>, %arg7: memref<1x128xf32, #tpu.memory_space<vmem>>, %arg8: memref<8x128xf32, #tpu.memory_space<vmem>>, %arg9: memref<8x128xf32, #tpu.memory_space<vmem>>, %arg10: memref<8x128xf32, #tpu.memory_space<vmem>>) attributes {dimension_semantics = [#tpu.dimension_semantics<parallel>, #tpu.dimension_semantics<arbitrary>, #tpu.dimension_semantics<arbitrary>], iteration_bounds = array<i64: 1, 2, 2>, scalar_prefetch = 0 : i64, scratch_operands = 2 : i64, tpu.core_type = #tpu.core_type<tc>, window_params = [{transform_indices = @transform_0, window_bounds = array<i64: 8, 8, 128>}, {transform_indices = @transform_1, window_bounds = array<i64: 128, 128>}, {pipeline_mode = #tpu.pipeline_mode<synchronous>, transform_indices = @transform_2, window_bounds = array<i64: 1, 128>}, {pipeline_mode = #tpu.pipeline_mode<synchronous>, transform_indices = @transform_3, window_bounds = array<i64: 128, 128>}, {pipeline_mode = #tpu.pipeline_mode<synchronous>, transform_indices = @transform_4, window_bounds = array<i64: 1, 128>}, {transform_indices = @transform_5, window_bounds = array<i64: 8, 128>}]} {
    %c0_i32 = arith.constant 0 : i32
    %0 = arith.cmpi eq, %arg1, %c0_i32 : i32
    %c0_i32_0 = arith.constant 0 : i32
    %1 = arith.cmpi eq, %arg2, %c0_i32_0 : i32
    %2 = arith.andi %0, %1 : i1
    %3 = arith.extui %2 : i1 to i32
    %c0_i32_1 = arith.constant 0 : i32
    %4 = arith.cmpi ne, %3, %c0_i32_1 : i32
    scf.if %4 {
      %cst_14 = arith.constant 0.000000e+00 : f32
      %21 = vector.broadcast %cst_14 : f32 to vector<8x128xf32>
      %c0_15 = arith.constant 0 : index
      %c0_16 = arith.constant 0 : index
      %22 = vector.load %arg10[%c0_15, %c0_16] : memref<8x128xf32, #tpu.memory_space<vmem>>, vector<8x128xf32>
      tpu.vector_store %arg10[%c0_15, %c0_16], %21 {strides = array<i32>} : memref<8x128xf32, #tpu.memory_space<vmem>>, vector<8x128xf32>,
    } else {
    }
    %c0_i32_2 = arith.constant 0 : i32
    %5 = arith.cmpi eq, %arg2, %c0_i32_2 : i32
    %6 = arith.extui %5 : i1 to i32
    %c0_i32_3 = arith.constant 0 : i32
    %7 = arith.cmpi ne, %6, %c0_i32_3 : i32
    scf.if %7 {
      %cst_14 = arith.constant 0.000000e+00 : f32
      %21 = vector.broadcast %cst_14 : f32 to vector<8x128xf32>
      %c0_15 = arith.constant 0 : index
      %c0_16 = arith.constant 0 : index
      %22 = vector.load %arg9[%c0_15, %c0_16] : memref<8x128xf32, #tpu.memory_space<vmem>>, vector<8x128xf32>
      tpu.vector_store %arg9[%c0_15, %c0_16], %21 {strides = array<i32>} : memref<8x128xf32, #tpu.memory_space<vmem>>, vector<8x128xf32>,
    } else {
    }
    %c0 = arith.constant 0 : index
    %c0_4 = arith.constant 0 : index
    %8 = vector.load %arg9[%c0, %c0_4] : memref<8x128xf32, #tpu.memory_space<vmem>>, vector<8x128xf32>
    %c0_5 = arith.constant 0 : index
    %c0_6 = arith.constant 0 : index
    %c0_7 = arith.constant 0 : index
    %9 = vector.load %arg3[%c0_5, %c0_6, %c0_7] : memref<8x8x128xf32, #tpu.memory_space<vmem>>, vector<8x8x128xf32>
    %cst = arith.constant dense<0.000000e+00> : vector<8x128xf32>
    %10 = vector.multi_reduction <add>, %9, %cst [1] : vector<8x8x128xf32> to vector<8x128xf32>
    %11 = arith.addf %8, %10 : vector<8x128xf32>
    %c0_8 = arith.constant 0 : index
    %c0_9 = arith.constant 0 : index
    %12 = vector.load %arg9[%c0_8, %c0_9] : memref<8x128xf32, #tpu.memory_space<vmem>>, vector<8x128xf32>
    tpu.vector_store %arg9[%c0_8, %c0_9], %11 {strides = array<i32>} : memref<8x128xf32, #tpu.memory_space<vmem>>, vector<8x128xf32>,
    %c1_i32 = arith.constant 1 : i32
    %13 = arith.cmpi eq, %arg2, %c1_i32 : i32
    %14 = arith.extui %13 : i1 to i32
    %c0_i32_10 = arith.constant 0 : i32
    %15 = arith.cmpi ne, %14, %c0_i32_10 : i32
    scf.if %15 {
      %c0_14 = arith.constant 0 : index
      %c0_15 = arith.constant 0 : index
      %21 = vector.load %arg9[%c0_14, %c0_15] : memref<8x128xf32, #tpu.memory_space<vmem>>, vector<8x128xf32>
      %22 = arith.truncf %21 : vector<8x128xf32> to vector<8x128xbf16>
      %c0_16 = arith.constant 0 : index
      %c0_17 = arith.constant 0 : index
      %23 = vector.load %arg10[%c0_16, %c0_17] : memref<8x128xf32, #tpu.memory_space<vmem>>, vector<8x128xf32>
      %c0_18 = arith.constant 0 : index
      %c0_19 = arith.constant 0 : index
      %24 = vector.load %arg4[%c0_18, %c0_19] : memref<128x128xbf16, #tpu.memory_space<vmem>>, vector<128x128xbf16>
      %cst_20 = arith.constant dense<0.000000e+00> : vector<8x128xf32>
      %25 = tpu.matmul %22, %24, %cst_20 {dimension_numbers = #tpu.dot_dimension_numbers<[1], [0], [0], [1], [0, 0, 1, 1], [], []>} : vector<8x128xbf16>, vector<128x128xbf16>, vector<8x128xf32> -> vector<8x128xf32>
      %26 = arith.addf %23, %25 : vector<8x128xf32>
      %c0_21 = arith.constant 0 : index
      %c0_22 = arith.constant 0 : index
      %27 = vector.load %arg10[%c0_21, %c0_22] : memref<8x128xf32, #tpu.memory_space<vmem>>, vector<8x128xf32>
      tpu.vector_store %arg10[%c0_21, %c0_22], %26 {strides = array<i32>} : memref<8x128xf32, #tpu.memory_space<vmem>>, vector<8x128xf32>,
    } else {
    }
    %c1_i32_11 = arith.constant 1 : i32
    %16 = arith.cmpi eq, %arg1, %c1_i32_11 : i32
    %c1_i32_12 = arith.constant 1 : i32
    %17 = arith.cmpi eq, %arg2, %c1_i32_12 : i32
    %18 = arith.andi %16, %17 : i1
    %19 = arith.extui %18 : i1 to i32
    %c0_i32_13 = arith.constant 0 : i32
    %20 = arith.cmpi ne, %19, %c0_i32_13 : i32
    scf.if %20 {
      %c0_14 = arith.constant 0 : index
      %c0_15 = arith.constant 0 : index
      %21 = vector.load %arg10[%c0_14, %c0_15] : memref<8x128xf32, #tpu.memory_space<vmem>>, vector<8x128xf32>
      %c0_16 = arith.constant 0 : index
      %c0_17 = arith.constant 0 : index
      %22 = vector.load %arg5[%c0_16, %c0_17] : memref<1x128xf32, #tpu.memory_space<vmem>>, vector<1x128xf32>
      %23 = vector.broadcast %22 : vector<1x128xf32> to vector<8x128xf32>
      %24 = arith.addf %21, %23 : vector<8x128xf32>
      %cst_18 = arith.constant 0.000000e+00 : f32
      %25 = vector.broadcast %cst_18 : f32 to vector<8x128xf32>
      %26 = arith.maximumf %24, %25 : vector<8x128xf32>
      %27 = arith.truncf %26 : vector<8x128xf32> to vector<8x128xbf16>
      %c0_19 = arith.constant 0 : index
      %c0_20 = arith.constant 0 : index
      %28 = vector.load %arg6[%c0_19, %c0_20] : memref<128x128xbf16, #tpu.memory_space<vmem>>, vector<128x128xbf16>
      %cst_21 = arith.constant dense<0.000000e+00> : vector<8x128xf32>
      %29 = tpu.matmul %27, %28, %cst_21 {dimension_numbers = #tpu.dot_dimension_numbers<[1], [0], [0], [1], [0, 0, 1, 1], [], []>} : vector<8x128xbf16>, vector<128x128xbf16>, vector<8x128xf32> -> vector<8x128xf32>
      %c0_22 = arith.constant 0 : index
      %c0_23 = arith.constant 0 : index
      %30 = vector.load %arg7[%c0_22, %c0_23] : memref<1x128xf32, #tpu.memory_space<vmem>>, vector<1x128xf32>
      %31 = vector.broadcast %30 : vector<1x128xf32> to vector<8x128xf32>
      %32 = arith.addf %29, %31 : vector<8x128xf32>
      %c0_24 = arith.constant 0 : index
      %c0_25 = arith.constant 0 : index
      %33 = vector.load %arg8[%c0_24, %c0_25] : memref<8x128xf32, #tpu.memory_space<vmem>>, vector<8x128xf32>
      tpu.vector_store %arg8[%c0_24, %c0_25], %32 {strides = array<i32>} : memref<8x128xf32, #tpu.memory_space<vmem>>, vector<8x128xf32>,
    } else {
    }
    return
  }
  func.func @transform_0(%arg0: i32, %arg1: i32, %arg2: i32) -> (i32, i32, i32) {
    %c0_i32 = arith.constant 0 : i32
    return %arg0, %arg2, %arg1 : i32, i32, i32
  }
  func.func @transform_1(%arg0: i32, %arg1: i32, %arg2: i32) -> (i32, i32) {
    %c0_i32 = arith.constant 0 : i32
    %c0_i32_0 = arith.constant 0 : i32
    return %arg1, %c0_i32 : i32, i32
  }
  func.func @transform_2(%arg0: i32, %arg1: i32, %arg2: i32) -> (i32, i32) {
    %c0_i32 = arith.constant 0 : i32
    %c0_i32_0 = arith.constant 0 : i32
    %c0_i32_1 = arith.constant 0 : i32
    return %c0_i32, %c0_i32_0 : i32, i32
  }
  func.func @transform_3(%arg0: i32, %arg1: i32, %arg2: i32) -> (i32, i32) {
    %c0_i32 = arith.constant 0 : i32
    %c0_i32_0 = arith.constant 0 : i32
    %c0_i32_1 = arith.constant 0 : i32
    return %c0_i32, %c0_i32_0 : i32, i32
  }
  func.func @transform_4(%arg0: i32, %arg1: i32, %arg2: i32) -> (i32, i32) {
    %c0_i32 = arith.constant 0 : i32
    %c0_i32_0 = arith.constant 0 : i32
    %c0_i32_1 = arith.constant 0 : i32
    return %c0_i32, %c0_i32_0 : i32, i32
  }
  func.func @transform_5(%arg0: i32, %arg1: i32, %arg2: i32) -> (i32, i32) {
    %c0_i32 = arith.constant 0 : i32
    %c0_i32_0 = arith.constant 0 : i32
    return %arg0, %c0_i32 : i32, i32
  }
}

</mosaic_0001>

<llo_original>
// kernel: tpu_custom_call.1
$region0: #{tpu_custom_call.1}
  #allocation0 [shape = 'u32[]', space=smem, size = 0x4, offset = 0x4, fixed_abs, tag = 'smem constant byte address 0x4 - core index']
  #allocation1 [shape = 'u32[72,128]{1,0:T(1,128)}', space=vmem, size = 0x9000, scoped, tag = 'internal scratch']
  #allocation2 [shape = 'f32[8,128]{1,0:T(8,128)}', space=vmem, size = 0x1000, scoped, tag = 'scratch operand']
  #allocation3 [shape = 'f32[8,128]{1,0:T(8,128)}', space=vmem, size = 0x1000, scoped, tag = 'scratch operand']
  %s0 = inlined_call_operand.hbm [shape: f32[8,16,256], index: 0, kind: input, shape index: {}]
  %s1 = inlined_call_operand.hbm [shape: bf16[256,128], index: 1, kind: input, shape index: {}]
  %s2 = inlined_call_operand.vmem [shape: f32[1,128], index: 2, kind: input, shape index: {}]
  %s3 = inlined_call_operand.hbm [shape: bf16[128,128], index: 3, kind: input, shape index: {}]
  %s4 = inlined_call_operand.vmem [shape: f32[1,128], index: 4, kind: input, shape index: {}]
  %s5 = inlined_call_operand.hbm [shape: f32[8,128], index: 5, kind: output, shape index: {}]
  %s6 = sld [smem:[#allocation0]]
  $region81: #{tpu_custom_call.1} parent=0
    _
  %s8 = ssub.s32 1, %s6
  %s9 = scalar_select 0, %s8, %s6
  $region1: #{tpu_custom_call.1} parent=0
    #allocation4 [shape = 'u8[65536]{0}', space=vmem, size = 0x10000, scoped, tag = 'input window, operand 0']
    #allocation5 [shape = 's32[2]{0}', space=sflag, size = 0x8, scoped, tag = 'scoped memory for tpu_custom_call.1']
    #allocation6 [shape = 's32[2]{0}', space=sflag, size = 0x8, scoped, tag = 'scoped memory for tpu_custom_call.1']
    #allocation7 [shape = 'u8[65536]{0}', space=vmem, size = 0x10000, scoped, tag = 'input window, operand 1']
    #allocation8 [shape = 's32[2]{0}', space=sflag, size = 0x8, scoped, tag = 'scoped memory for tpu_custom_call.1']
    #allocation9 [shape = 'u8[32768]{0}', space=vmem, size = 0x8000, scoped, tag = 'input window, operand 3, single buffered']
    #allocation10 [shape = 'u8[4096]{0}', space=vmem, size = 0x1000, scoped, tag = 'output window, operand 0, single buffered']
    %10 = vsyncpa [#allocation5], 0
    %s11 = scalar_lea.sflag [#allocation5], 1
    %12 = vsyncpa %s11, 0
    %13 = vsyncpa [#allocation8], 0
    %s14 = scalar_lea.sflag [#allocation8], 1
    %15 = vsyncpa %s14, 0
    %16 = vsyncpa [#allocation6], 0
    loop: start=0, step=1, limit=6
    $region2: #{tpu_custom_call.1} parent=1 // loop_pre_header
      _
    $region3: #{tpu_custom_call.1} parent=1 // loop_header
      %s18 = sphi 0, %s22
      %p19 = scmp.ge.s32.totalorder %s18, 6
      %s25 = sphi 0, %s44
      %s26 = sphi 0, %s40
      %s27 = sphi 0, %s36
      %s28 = sphi 0, %s25
      %s29 = sphi 0, %s26
      %s30 = sphi 0, %s27
      %s31 = sphi 0, %s28
      %s32 = sphi 0, %s29
      %s33 = sphi 0, %s30
      %s51 = sphi 0, %s53
      %s54 = sphi 0, %s51
      %s55 = sphi 0, %s54
      %s71 = sphi 0, %s55
      %s77 = sphi 0, %s79
      %s80 = sphi 0, %s77
      %s81 = sphi 0, %s80
      %s97 = sphi 0, %s81
      %s101 = sphi 0, %s101
      %s103 = sphi 0, %s101
      %s104 = sphi 0, %s103
      %s118 = sphi 0, %s104
      %s122 = sphi 0, %s122
      %s124 = sphi 0, %s122
      %s125 = sphi 0, %s124
      %s139 = sphi 0, %s125
      %s143 = sphi 0, %s143
      %s145 = sphi 0, %s143
      %s146 = sphi 0, %s145
      %s160 = sphi 0, %s146
      %s166 = sphi 0, %s168
      %s169 = sphi 0, %s166
      %s170 = sphi 0, %s169
      %s186 = sphi 0, %s170
    $region4: #{tpu_custom_call.1} parent=1 // loop_header_branch
      %21 = sbr.rel (%p19) target = $region8
    $region5: #{tpu_custom_call.1} parent=1 // loop_body
      %s23 = ssub.s32 %s18, 1
      %s24 = ssub.s32 %s18, 2
      %s34 = sadd.s32 1, %s27
      %p35 = scmp.ge.s32.totalorder %s34, 2
      %s36 = scalar_select %p35, 0, %s34
      %s37 = sadd.s32 1, %s26
      %s38 = scalar_select %p35, %s37, %s26
      %p39 = scmp.ge.s32.totalorder %s38, 2
      %s40 = scalar_select %p39, 0, %s38
      %s41 = sadd.s32 1, %s25
      %s42 = scalar_select %p39, %s41, %s25
      %p43 = scmp.ge.s32.totalorder %s42, 1
      %s44 = scalar_select %p43, 0, %s42
      %s45 = ssub.s32 %s25, %s44
      %s46 = ssub.s32 %s27, %s36
      %s47 = sor.u32 %s45, %s46
      %s48 = ssub.s32 %s26, %s40
      %s49 = sor.u32 %s47, %s48
      %p50 = scmp.eq.s32.totalorder %s49, 0
      %s52 = sadd.s32 %s51, 1
      %s53 = scalar_select %p50, %s51, %s52
      %p56 = pneg %p50
      %p57 = scmp.eq.s32.totalorder %s18, 3
      %p58 = por %p56, %p57
      %p59 = scmp.ne.s32.totalorder %s51, %s54
      %p60 = scmp.eq.s32.totalorder %s18, 0
      %p61 = por %p59, %p60
      %p62 = scmp.ne.s32.totalorder %s51, %s54
      %p63 = scmp.eq.s32.totalorder %s23, 3
      %p64 = por %p62, %p63
      %p65 = scmp.ne.s32.totalorder %s54, %s55
      %p66 = scmp.eq.s32.totalorder %s23, 0
      %p67 = por %p65, %p66
      %p68 = scmp.ne.s32.totalorder %s54, %s55
      %p69 = scmp.eq.s32.totalorder %s24, 3
      %p70 = por %p68, %p69
      %p72 = scmp.ne.s32.totalorder %s55, %s71
      %p73 = scmp.eq.s32.totalorder %s24, 0
      %p74 = por %p72, %p73
      %s75 = ssub.s32 %s26, %s40
      %p76 = scmp.eq.s32.totalorder %s75, 0
      %s78 = sadd.s32 %s77, 1
      %s79 = scalar_select %p76, %s77, %s78
      %p82 = pneg %p76
      %p83 = scmp.eq.s32.totalorder %s18, 3
      %p84 = por %p82, %p83
      %p85 = scmp.ne.s32.totalorder %s77, %s80
      %p86 = scmp.eq.s32.totalorder %s18, 0
      %p87 = por %p85, %p86
      %p88 = scmp.ne.s32.totalorder %s77, %s80
      %p89 = scmp.eq.s32.totalorder %s23, 3
      %p90 = por %p88, %p89
      %p91 = scmp.ne.s32.totalorder %s80, %s81
      %p92 = scmp.eq.s32.totalorder %s23, 0
      %p93 = por %p91, %p92
      %p94 = scmp.ne.s32.totalorder %s80, %s81
      %p95 = scmp.eq.s32.totalorder %s24, 3
      %p96 = por %p94, %p95
      %p98 = scmp.ne.s32.totalorder %s81, %s97
      %p99 = scmp.eq.s32.totalorder %s24, 0
      %p100 = por %p98, %p99
      %s102 = sadd.s32 %s101, 1
      %p105 = scmp.eq.s32.totalorder %s18, 3
      %p106 = scmp.ne.s32.totalorder %s101, %s103
      %p107 = scmp.eq.s32.totalorder %s18, 0
      %p108 = por %p106, %p107
      %p109 = scmp.ne.s32.totalorder %s101, %s103
      %p110 = scmp.eq.s32.totalorder %s23, 3
      %p111 = por %p109, %p110
      %p112 = scmp.ne.s32.totalorder %s103, %s104
      %p113 = scmp.eq.s32.totalorder %s23, 0
      %p114 = por %p112, %p113
      %p115 = scmp.ne.s32.totalorder %s103, %s104
      %p116 = scmp.eq.s32.totalorder %s24, 3
      %p117 = por %p115, %p116
      %p119 = scmp.ne.s32.totalorder %s104, %s118
      %p120 = scmp.eq.s32.totalorder %s24, 0
      %p121 = por %p119, %p120
      %s123 = sadd.s32 %s122, 1
      %p126 = scmp.eq.s32.totalorder %s18, 3
      %p127 = scmp.ne.s32.totalorder %s122, %s124
      %p128 = scmp.eq.s32.totalorder %s18, 0
      %p129 = por %p127, %p128
      %p130 = scmp.ne.s32.totalorder %s122, %s124
      %p131 = scmp.eq.s32.totalorder %s23, 3
      %p132 = por %p130, %p131
      %p133 = scmp.ne.s32.totalorder %s124, %s125
      %p134 = scmp.eq.s32.totalorder %s23, 0
      %p135 = por %p133, %p134
      %p136 = scmp.ne.s32.totalorder %s124, %s125
      %p137 = scmp.eq.s32.totalorder %s24, 3
      %p138 = por %p136, %p137
      %p140 = scmp.ne.s32.totalorder %s125, %s139
      %p141 = scmp.eq.s32.totalorder %s24, 0
      %p142 = por %p140, %p141
      %s144 = sadd.s32 %s143, 1
      %p147 = scmp.eq.s32.totalorder %s18, 3
      %p148 = scmp.ne.s32.totalorder %s143, %s145
      %p149 = scmp.eq.s32.totalorder %s18, 0
      %p150 = por %p148, %p149
      %p151 = scmp.ne.s32.totalorder %s143, %s145
      %p152 = scmp.eq.s32.totalorder %s23, 3
      %p153 = por %p151, %p152
      %p154 = scmp.ne.s32.totalorder %s145, %s146
      %p155 = scmp.eq.s32.totalorder %s23, 0
      %p156 = por %p154, %p155
      %p157 = scmp.ne.s32.totalorder %s145, %s146
      %p158 = scmp.eq.s32.totalorder %s24, 3
      %p159 = por %p157, %p158
      %p161 = scmp.ne.s32.totalorder %s146, %s160
      %p162 = scmp.eq.s32.totalorder %s24, 0
      %p163 = por %p161, %p162
      %s164 = ssub.s32 %s25, %s44
      %p165 = scmp.eq.s32.totalorder %s164, 0
      %s167 = sadd.s32 %s166, 1
      %s168 = scalar_select %p165, %s166, %s167
      %p171 = pneg %p165
      %p172 = scmp.eq.s32.totalorder %s18, 3
      %p173 = por %p171, %p172
      %p174 = scmp.ne.s32.totalorder %s166, %s169
      %p175 = scmp.eq.s32.totalorder %s18, 0
      %p176 = por %p174, %p175
      %p177 = scmp.ne.s32.totalorder %s166, %s169
      %p178 = scmp.eq.s32.totalorder %s23, 3
      %p179 = por %p177, %p178
      %p180 = scmp.ne.s32.totalorder %s169, %s170
      %p181 = scmp.eq.s32.totalorder %s23, 0
      %p182 = por %p180, %p181
      %p183 = scmp.ne.s32.totalorder %s169, %s170
      %p184 = scmp.eq.s32.totalorder %s24, 3
      %p185 = por %p183, %p184
      %p187 = scmp.ne.s32.totalorder %s170, %s186
      %p188 = scmp.eq.s32.totalorder %s24, 0
      %p189 = por %p187, %p188
      %p190 = scmp.le.s32.totalorder 1, %s18
      %p191 = scmp.lt.s32.totalorder %s18, 5
      %p192 = pnand %p190, %p191
      %p193 = pneg %p192
      // Predicated region
      $region9: #{tpu_custom_call.1} parent=5 // pred_check
        _
      $region10: #{tpu_custom_call.1} parent=5 // pred_check_branch
        %195 = sbr.rel (%p192) target = $region12
      $region11: #{tpu_custom_call.1} parent=5 // pred_region
        %s196 = ssub.s32 %s18, 1
        // Predicated region
        $region13: #{tpu_custom_call.1} parent=11 // pred_check
          %p197 = pneg %p114
        $region14: #{tpu_custom_call.1} parent=11 // pred_check_branch
          %199 = sbr.rel (%p197) target = $region16
        $region15: #{tpu_custom_call.1} parent=11 // pred_region
          _
        $region16: #{tpu_custom_call.1} parent=11 // pred_fallthru
          _
        // Predicated region
        $region17: #{tpu_custom_call.1} parent=11 // pred_check
          %p200 = pneg %p135
        $region18: #{tpu_custom_call.1} parent=11 // pred_check_branch
          %202 = sbr.rel (%p200) target = $region20
        $region19: #{tpu_custom_call.1} parent=11 // pred_region
          %204 = vsyncadd [#allocation8], 0
          %s205 = sshll.u32 %s3, 4
          %s206 = int_to_ptr.hbm [resolvable:$true] %s205
          %s207 = sshll.u32 [#allocation9], 4
          %s208 = int_to_ptr.vmem [resolvable:$true] %s207
          %213 = dma.hbm_to_vmem [thread:$0]  %s206, 1024, %s208, [#allocation8], 64, 64, 4
        $region20: #{tpu_custom_call.1} parent=11 // pred_fallthru
          _
        // Predicated region
        $region21: #{tpu_custom_call.1} parent=11 // pred_check
          %p214 = pneg %p156
        $region22: #{tpu_custom_call.1} parent=11 // pred_check_branch
          %216 = sbr.rel (%p214) target = $region24
        $region23: #{tpu_custom_call.1} parent=11 // pred_region
          _
        $region24: #{tpu_custom_call.1} parent=11 // pred_fallthru
          _
      $region12: #{tpu_custom_call.1} parent=5 // pred_fallthru
        _
      %p217 = scmp.lt.s32.totalorder %s18, 4
      // Predicated region
      $region25: #{tpu_custom_call.1} parent=5 // pred_check
        %p218 = pneg %p217
      $region26: #{tpu_custom_call.1} parent=5 // pred_check_branch
        %220 = sbr.rel (%p218) target = $region28
      $region27: #{tpu_custom_call.1} parent=5 // pred_region
        // Predicated region
        $region29: #{tpu_custom_call.1} parent=27 // pred_check
          %p221 = pneg %p61
        $region30: #{tpu_custom_call.1} parent=27 // pred_check_branch
          %223 = sbr.rel (%p221) target = $region32
        $region31: #{tpu_custom_call.1} parent=27 // pred_region
          %s224 = sand.u32 %s51, 1
          %s225 = scalar_lea.sflag [#allocation5], %s224
          %s226 = sand.u32 %s51, 1
          %s227 = smul.addr %s226, 64
          %s228 = scalar_lea.vmem [#allocation4], %s227
          %s229 = smul.u32 8, %s25
          %231 = vsyncadd %s225, 0
          %s232 = smul.addr %s27, 2
          %s233 = sadd.s32 %s26, %s232
          %s234 = smul.addr %s229, 4
          %s235 = sadd.s32 %s233, %s234
          %s236 = smul.addr %s235, 8
          %s237 = scalar_lea.hbm %s0, %s236
          %s238 = sshll.u32 %s237, 4
          %s239 = int_to_ptr.hbm [resolvable:$true] %s238
          %s240 = sshll.u32 %s228, 4
          %s241 = int_to_ptr.vmem [resolvable:$true] %s240
          %246 = dma.hbm_to_vmem [thread:$0]  %s239, 1024, %s241, %s225, 512, 128, 8
        $region32: #{tpu_custom_call.1} parent=27 // pred_fallthru
          _
        // Predicated region
        $region33: #{tpu_custom_call.1} parent=27 // pred_check
          %p247 = pneg %p87
        $region34: #{tpu_custom_call.1} parent=27 // pred_check_branch
          %249 = sbr.rel (%p247) target = $region36
        $region35: #{tpu_custom_call.1} parent=27 // pred_region
          %s250 = sand.u32 %s18, 1
          %s251 = scalar_lea.sflag [#allocation8], %s250
          %s252 = sand.u32 %s77, 1
          %s253 = smul.addr %s252, 64
          %s254 = scalar_lea.vmem [#allocation7], %s253
          %s255 = smul.u32 16, %s26
          %257 = vsyncadd %s251, 0
          %s258 = smul.addr %s255, 4
          %s259 = scalar_lea.hbm %s1, %s258
          %s260 = sshll.u32 %s259, 4
          %s261 = int_to_ptr.hbm [resolvable:$true] %s260
          %s262 = sshll.u32 %s254, 4
          %s263 = int_to_ptr.vmem [resolvable:$true] %s262
          %268 = dma.hbm_to_vmem [thread:$0]  %s261, 1024, %s263, %s251, 64, 64, 4
        $region36: #{tpu_custom_call.1} parent=27 // pred_fallthru
          _
      $region28: #{tpu_custom_call.1} parent=5 // pred_fallthru
        _
      %p269 = scmp.le.s32.totalorder 1, %s18
      %p270 = scmp.lt.s32.totalorder %s18, 5
      %p271 = pnand %p269, %p270
      %p272 = pneg %p271
      // Predicated region
      $region37: #{tpu_custom_call.1} parent=5 // pred_check
        _
      $region38: #{tpu_custom_call.1} parent=5 // pred_check_branch
        %274 = sbr.rel (%p271) target = $region40
      $region39: #{tpu_custom_call.1} parent=5 // pred_region
        %s275 = ssub.s32 %s18, 1
        %s276 = sand.u32 %s54, 1
        %s277 = scalar_lea.sflag [#allocation5], %s276
        %s278 = sand.u32 %s54, 1
        %s279 = smul.addr %s278, 64
        %s280 = scalar_lea.vmem [#allocation4], %s279
        // Predicated region
        $region41: #{tpu_custom_call.1} parent=39 // pred_check
          %p281 = pneg %p67
        $region42: #{tpu_custom_call.1} parent=39 // pred_check_branch
          %283 = sbr.rel (%p281) target = $region44
        $region43: #{tpu_custom_call.1} parent=39 // pred_region
          %285 = dma.done %s277, 1024
        $region44: #{tpu_custom_call.1} parent=39 // pred_fallthru
          _
        %s286 = sand.u32 %s23, 1
        %s287 = scalar_lea.sflag [#allocation8], %s286
        %s288 = sand.u32 %s80, 1
        %s289 = smul.addr %s288, 64
        %s290 = scalar_lea.vmem [#allocation7], %s289
        // Predicated region
        $region45: #{tpu_custom_call.1} parent=39 // pred_check
          %p291 = pneg %p93
        $region46: #{tpu_custom_call.1} parent=39 // pred_check_branch
          %293 = sbr.rel (%p291) target = $region48
        $region47: #{tpu_custom_call.1} parent=39 // pred_region
          %295 = dma.done %s287, 1024
        $region48: #{tpu_custom_call.1} parent=39 // pred_fallthru
          _
        // Predicated region
        $region49: #{tpu_custom_call.1} parent=39 // pred_check
          %p296 = pneg %p135
        $region50: #{tpu_custom_call.1} parent=39 // pred_check_branch
          %298 = sbr.rel (%p296) target = $region52
        $region51: #{tpu_custom_call.1} parent=39 // pred_region
          %300 = dma.done [#allocation8], 1024
        $region52: #{tpu_custom_call.1} parent=39 // pred_fallthru
          _
        %s301 = sand.u32 %s54, 1
        %s302 = scalar_lea.sflag [#allocation5], %s301
        %s303 = sand.u32 %s54, 1
        %s304 = smul.addr %s303, 64
        %s305 = scalar_lea.vmem [#allocation4], %s304
        %p306 = pneg %p67
        %p307 = pneg %p64
        %s308 = sand.u32 %s23, 1
        %s309 = scalar_lea.sflag [#allocation8], %s308
        %s310 = sand.u32 %s80, 1
        %s311 = smul.addr %s310, 64
        %s312 = scalar_lea.vmem [#allocation7], %s311
        %p313 = pneg %p93
        %p314 = pneg %p90
        %p315 = pneg %p114
        %p316 = pneg %p111
        %p317 = pneg %p135
        %p318 = pneg %p132
        %p319 = pneg %p156
        %p320 = pneg %p153
        %p321 = pneg %p182
        %p322 = pneg %p179
        %s323 = smul.u32 8, %s28
        %s324 = smul.u32 16, %s29
        %p325 = scmp.eq.s32.totalorder %s29, 0
        %p326 = scmp.eq.s32.totalorder %s30, 0
        %p327 = pnand %p325, %p326
        %p328 = pneg %p327
        // Predicated region
        $region53: #{tpu_custom_call.1} parent=39 // pred_check
          _
        $region54: #{tpu_custom_call.1} parent=39 // pred_check_branch
          %330 = sbr.rel (%p327) target = $region56
        $region55: #{tpu_custom_call.1} parent=39 // pred_region
          %331 = vst [vmem:[#allocation3] sm:$0xff] 0.0
        $region56: #{tpu_custom_call.1} parent=39 // pred_fallthru
          _
        // Predicated region
        $region57: #{tpu_custom_call.1} parent=39 // pred_check
          %p332 = pneg %p326
        $region58: #{tpu_custom_call.1} parent=39 // pred_check_branch
          %334 = sbr.rel (%p332) target = $region60
        $region59: #{tpu_custom_call.1} parent=39 // pred_region
          %335 = vst [vmem:[#allocation2] sm:$0xff] 0.0
        $region60: #{tpu_custom_call.1} parent=39 // pred_fallthru
          _
        %v336 = vld [vmem:[#allocation2] sm:$0xff]
        %v337 = vld [vmem:[%s280] sm:$0xff]
        %v338 = vld [vmem:[%s280 + $0x8] sm:$0xff]
        %v339 = vld [vmem:[%s280 + $0x10] sm:$0xff]
        %v340 = vld [vmem:[%s280 + $0x18] sm:$0xff]
        %v341 = vld [vmem:[%s280 + $0x20] sm:$0xff]
        %v342 = vld [vmem:[%s280 + $0x28] sm:$0xff]
        %v343 = vld [vmem:[%s280 + $0x30] sm:$0xff]
        %v344 = vld [vmem:[%s280 + $0x38] sm:$0xff]
        %v345 = vrot.slane %v337, 4
        %v346 = vadd.f32 %v337, %v345
        %v347 = vrot.slane %v346, 2
        %v348 = vadd.f32 %v346, %v347
        %v349 = vrot.slane %v348, 1
        %v350 = vadd.f32 %v348, %v349
        %v351 = vrot.slane %v338, 4
        %v352 = vadd.f32 %v338, %v351
        %v353 = vrot.slane %v352, 2
        %v354 = vadd.f32 %v352, %v353
        %v355 = vrot.slane %v354, 1
        %v356 = vadd.f32 %v354, %v355
        %v357 = vrot.slane %v339, 4
        %v358 = vadd.f32 %v339, %v357
        %v359 = vrot.slane %v358, 2
        %v360 = vadd.f32 %v358, %v359
        %v361 = vrot.slane %v360, 1
        %v362 = vadd.f32 %v360, %v361
        %v363 = vrot.slane %v340, 4
        %v364 = vadd.f32 %v340, %v363
        %v365 = vrot.slane %v364, 2
        %v366 = vadd.f32 %v364, %v365
        %v367 = vrot.slane %v366, 1
        %v368 = vadd.f32 %v366, %v367
        %v369 = vrot.slane %v341, 4
        %v370 = vadd.f32 %v341, %v369
        %v371 = vrot.slane %v370, 2
        %v372 = vadd.f32 %v370, %v371
        %v373 = vrot.slane %v372, 1
        %v374 = vadd.f32 %v372, %v373
        %v375 = vrot.slane %v342, 4
        %v376 = vadd.f32 %v342, %v375
        %v377 = vrot.slane %v376, 2
        %v378 = vadd.f32 %v376, %v377
        %v379 = vrot.slane %v378, 1
        %v380 = vadd.f32 %v378, %v379
        %v381 = vrot.slane %v343, 4
        %v382 = vadd.f32 %v343, %v381
        %v383 = vrot.slane %v382, 2
        %v384 = vadd.f32 %v382, %v383
        %v385 = vrot.slane %v384, 1
        %v386 = vadd.f32 %v384, %v385
        %v387 = vrot.slane %v344, 4
        %v388 = vadd.f32 %v344, %v387
        %v389 = vrot.slane %v388, 2
        %v390 = vadd.f32 %v388, %v389
        %v391 = vrot.slane %v390, 1
        %v392 = vadd.f32 %v390, %v391
        %vm401 = vcmask 1041409
        %v402 = vsel %vm401, %v356, %v350
        %vm403 = vcmask 1042434
        %v404 = vsel %vm403, %v362, %v402
        %vm405 = vcmask 1043459
        %v406 = vsel %vm405, %v368, %v404
        %vm407 = vcmask 1044484
        %v408 = vsel %vm407, %v374, %v406
        %vm409 = vcmask 1045509
        %v410 = vsel %vm409, %v380, %v408
        %vm411 = vcmask 1046534
        %v412 = vsel %vm411, %v386, %v410
        %vm413 = vcmask 1047559
        %v414 = vsel %vm413, %v392, %v412
        %v416 = vadd.f32 %v336, %v414
        %417 = vst [vmem:[#allocation2] sm:$0xff] %v416
        %p418 = scmp.eq.s32.totalorder %s30, 1
        // Predicated region
        $region61: #{tpu_custom_call.1} parent=39 // pred_check
          %p419 = pneg %p418
        $region62: #{tpu_custom_call.1} parent=39 // pred_check_branch
          %421 = sbr.rel (%p419) target = $region64
        $region63: #{tpu_custom_call.1} parent=39 // pred_region
          %v422 = vld [vmem:[#allocation2] sm:$0xff]
          %v423 = vpack.c.bf16 %v422, %v422
          %v424 = vld [vmem:[#allocation3] sm:$0xff]
          %v425 = vld [vmem:[%s290] sm:$0xf]
          %v426 = vld [vmem:[%s290 + $0x4] sm:$0xf]
          %v427 = vld [vmem:[%s290 + $0x8] sm:$0xf]
          %v428 = vld [vmem:[%s290 + $0xc] sm:$0xf]
          %v429 = vld [vmem:[%s290 + $0x10] sm:$0xf]
          %v430 = vld [vmem:[%s290 + $0x14] sm:$0xf]
          %v431 = vld [vmem:[%s290 + $0x18] sm:$0xf]
          %v432 = vld [vmem:[%s290 + $0x1c] sm:$0xf]
          %v433 = vld [vmem:[%s290 + $0x20] sm:$0xf]
          %v434 = vld [vmem:[%s290 + $0x24] sm:$0xf]
          %v435 = vld [vmem:[%s290 + $0x28] sm:$0xf]
          %v436 = vld [vmem:[%s290 + $0x2c] sm:$0xf]
          %v437 = vld [vmem:[%s290 + $0x30] sm:$0xf]
          %v438 = vld [vmem:[%s290 + $0x34] sm:$0xf]
          %v439 = vld [vmem:[%s290 + $0x38] sm:$0xf]
          %v440 = vld [vmem:[%s290 + $0x3c] sm:$0xf]
          %v457 = vunpack.c.l.b16 %v425
          %v458 = vunpack.c.l.b16 %v426
          %v459 = vunpack.c.l.b16 %v427
          %v460 = vunpack.c.l.b16 %v428
          %v461 = vunpack.c.l.b16 %v429
          %v462 = vunpack.c.l.b16 %v430
          %v463 = vunpack.c.l.b16 %v431
          %v464 = vunpack.c.l.b16 %v432
          %v465 = vunpack.c.l.b16 %v433
          %v466 = vunpack.c.l.b16 %v434
          %v467 = vunpack.c.l.b16 %v435
          %v468 = vunpack.c.l.b16 %v436
          %v469 = vunpack.c.l.b16 %v437
          %v470 = vunpack.c.l.b16 %v438
          %v471 = vunpack.c.l.b16 %v439
          %v472 = vunpack.c.l.b16 %v440
          %v473 = vpack.c.b16 %v458, %v457
          %v474 = vpack.c.b16 %v460, %v459
          %v475 = vpack.c.b16 %v462, %v461
          %v476 = vpack.c.b16 %v464, %v463
          %v477 = vpack.c.b16 %v466, %v465
          %v478 = vpack.c.b16 %v468, %v467
          %v479 = vpack.c.b16 %v470, %v469
          %v480 = vpack.c.b16 %v472, %v471
          %489 = vmatpush.bf16.msra.mxu0 %v480
          %490 = vmatpush.bf16.msra.mxu0 %v479
          %491 = vmatpush.bf16.msra.mxu0 %v478
          %492 = vmatpush.bf16.msra.mxu0 %v477
          %493 = vmatpush.bf16.msra.mxu0 %v476
          %494 = vmatpush.bf16.msra.mxu0 %v475
          %495 = vmatpush.bf16.msra.mxu0 %v474
          %496 = vmatpush.bf16.msra.mxu0 %v473
          %497 = vmatmul.bf16.gmra.mxu0 %v423
          %v498 = vpop.f32.mrf.mxu0
          %v499 = vadd.f32 0.0, %v498
          %v500 = vpop.f32.mrf.mxu0
          %501 = vdwg.mxu0
          %v502 = vadd.f32 %v424, %v499
          %503 = vst [vmem:[#allocation3] sm:$0xff] %v502
        $region64: #{tpu_custom_call.1} parent=39 // pred_fallthru
          _
        %p504 = scmp.eq.s32.totalorder %s29, 1
        %p505 = pnand %p504, %p418
        %p506 = pneg %p505
        // Predicated region
        $region65: #{tpu_custom_call.1} parent=39 // pred_check
          _
        $region66: #{tpu_custom_call.1} parent=39 // pred_check_branch
          %508 = sbr.rel (%p505) target = $region68
        $region67: #{tpu_custom_call.1} parent=39 // pred_region
          %v509 = vld [vmem:[#allocation3] sm:$0xff]
          %v510 = vld [vmem:[%s2] sm:$0x1]
          %v512 = vperm.slane %v510, 0
          %v514 = vadd.f32 %v509, %v512
          %v515 = vmax.f32 %v514, 0.0
          %v516 = vpack.c.bf16 %v515, %v515
          %v517 = vld [vmem:[#allocation9] sm:$0xf]
          %v518 = vld [vmem:[#allocation9 + $0x4] sm:$0xf]
          %v519 = vld [vmem:[#allocation9 + $0x8] sm:$0xf]
          %v520 = vld [vmem:[#allocation9 + $0xc] sm:$0xf]
          %v521 = vld [vmem:[#allocation9 + $0x10] sm:$0xf]
          %v522 = vld [vmem:[#allocation9 + $0x14] sm:$0xf]
          %v523 = vld [vmem:[#allocation9 + $0x18] sm:$0xf]
          %v524 = vld [vmem:[#allocation9 + $0x1c] sm:$0xf]
          %v525 = vld [vmem:[#allocation9 + $0x20] sm:$0xf]
          %v526 = vld [vmem:[#allocation9 + $0x24] sm:$0xf]
          %v527 = vld [vmem:[#allocation9 + $0x28] sm:$0xf]
          %v528 = vld [vmem:[#allocation9 + $0x2c] sm:$0xf]
          %v529 = vld [vmem:[#allocation9 + $0x30] sm:$0xf]
          %v530 = vld [vmem:[#allocation9 + $0x34] sm:$0xf]
          %v531 = vld [vmem:[#allocation9 + $0x38] sm:$0xf]
          %v532 = vld [vmem:[#allocation9 + $0x3c] sm:$0xf]
          %v533 = vld [vmem:[%s4] sm:$0x1]
          %v535 = vperm.slane %v533, 0
          %v553 = vunpack.c.l.b16 %v517
          %v554 = vunpack.c.l.b16 %v518
          %v555 = vunpack.c.l.b16 %v519
          %v556 = vunpack.c.l.b16 %v520
          %v557 = vunpack.c.l.b16 %v521
          %v558 = vunpack.c.l.b16 %v522
          %v559 = vunpack.c.l.b16 %v523
          %v560 = vunpack.c.l.b16 %v524
          %v561 = vunpack.c.l.b16 %v525
          %v562 = vunpack.c.l.b16 %v526
          %v563 = vunpack.c.l.b16 %v527
          %v564 = vunpack.c.l.b16 %v528
          %v565 = vunpack.c.l.b16 %v529
          %v566 = vunpack.c.l.b16 %v530
          %v567 = vunpack.c.l.b16 %v531
          %v568 = vunpack.c.l.b16 %v532
          %v569 = vpack.c.b16 %v554, %v553
          %v570 = vpack.c.b16 %v556, %v555
          %v571 = vpack.c.b16 %v558, %v557
          %v572 = vpack.c.b16 %v560, %v559
          %v573 = vpack.c.b16 %v562, %v561
          %v574 = vpack.c.b16 %v564, %v563
          %v575 = vpack.c.b16 %v566, %v565
          %v576 = vpack.c.b16 %v568, %v567
          %585 = vmatpush.bf16.msra.mxu0 %v576
          %586 = vmatpush.bf16.msra.mxu0 %v575
          %587 = vmatpush.bf16.msra.mxu0 %v574
          %588 = vmatpush.bf16.msra.mxu0 %v573
          %589 = vmatpush.bf16.msra.mxu0 %v572
          %590 = vmatpush.bf16.msra.mxu0 %v571
          %591 = vmatpush.bf16.msra.mxu0 %v570
          %592 = vmatpush.bf16.msra.mxu0 %v569
          %593 = vmatmul.bf16.gmra.mxu0 %v516
          %v594 = vpop.f32.mrf.mxu0
          %v595 = vadd.f32 %v535, %v594
          %v596 = vpop.f32.mrf.mxu0
          %597 = vdwg.mxu0
          %598 = vst [vmem:[#allocation10] sm:$0xff] %v595
        $region68: #{tpu_custom_call.1} parent=39 // pred_fallthru
          _
        // Predicated region
        $region69: #{tpu_custom_call.1} parent=39 // pred_check
          %p599 = pneg %p179
        $region70: #{tpu_custom_call.1} parent=39 // pred_check_branch
          %601 = sbr.rel (%p599) target = $region72
        $region71: #{tpu_custom_call.1} parent=39 // pred_region
          %603 = vsyncadd [#allocation6], 0
          %s604 = smul.addr %s28, 8
          %s605 = scalar_lea.hbm %s5, %s604
          %s607 = sshll.u32 [#allocation10], 4
          %s608 = int_to_ptr.vmem [resolvable:$true] %s607
          %s609 = sshll.u32 %s605, 4
          %s610 = int_to_ptr.hbm [resolvable:$true] %s609
          %612 = dma.vmem_to_hbm [thread:$0]  %s608, 128, %s610, [#allocation6]
        $region72: #{tpu_custom_call.1} parent=39 // pred_fallthru
          _
        // Predicated region
        $region73: #{tpu_custom_call.1} parent=39 // pred_check
          %p613 = pneg %p179
        $region74: #{tpu_custom_call.1} parent=39 // pred_check_branch
          %615 = sbr.rel (%p613) target = $region76
        $region75: #{tpu_custom_call.1} parent=39 // pred_region
          %617 = dma.done [#allocation6], 128
        $region76: #{tpu_custom_call.1} parent=39 // pred_fallthru
          _
      $region40: #{tpu_custom_call.1} parent=5 // pred_fallthru
        _
      %p618 = scmp.le.s32.totalorder 2, %s18
      // Predicated region
      $region77: #{tpu_custom_call.1} parent=5 // pred_check
        %p619 = pneg %p618
      $region78: #{tpu_custom_call.1} parent=5 // pred_check_branch
        %621 = sbr.rel (%p619) target = $region80
      $region79: #{tpu_custom_call.1} parent=5 // pred_region
        %s622 = ssub.s32 %s18, 2
      $region80: #{tpu_custom_call.1} parent=5 // pred_fallthru
        _
    $region6: #{tpu_custom_call.1} parent=1 // loop_footer
      %s22 = sadd.s32 1, %s18
    $region7: #{tpu_custom_call.1} parent=1 // loop_footer_branch
      %17 = sbr.rel target = $region3
    $region8: #{tpu_custom_call.1} parent=1 // loop_exit
      _
    %623 = vsyncpa [#allocation5], 1
    %s624 = scalar_lea.sflag [#allocation5], 1
    %625 = vsyncpa %s624, 1
    %626 = vsyncpa [#allocation8], 1
    %s627 = scalar_lea.sflag [#allocation8], 1
    %628 = vsyncpa %s627, 1
    %629 = vsyncpa [#allocation6], 1
    %s630 = scalar_lea.sflag [#allocation6], 1
    %631 = vsyncpa %s630, 1

</llo_original>
